<compile_context>
chip_gen: v6e
topology: v6e:2x2x1
jax: 0.10.0
libtpu: 0.0.40
codegen_flags: <defaults>
</compile_context>

<pallas_src>
import functools

import jax
import jax.numpy as jnp
from jax.experimental import pallas as pl
from jax.experimental.pallas import tpu as pltpu


def _linear_attn_kernel(x_ref, wk_ref, wv_ref, wq_ref, wproj_ref, bproj_ref,
                        mask_ref, o_ref, *, batch_block, seq_len):
    Bt, N = batch_block, seq_len
    C = x_ref.shape[-1]

    # bf16 operands for the rows-M MXU matmuls; accumulate in f32.
    x_bf = x_ref[...].astype(jnp.bfloat16)                                 # (Bt*N, C)

    # k / v projections as two separate dots sharing the resident x slab
    # (avoids sub-128-lane slices of a fused (rows, 2C) result at small C).
    k = jnp.dot(x_bf, wk_ref[...], preferred_element_type=jnp.float32)     # (Bt*N, C)
    v = jnp.dot(x_bf, wv_ref[...], preferred_element_type=jnp.float32)     # (Bt*N, C)
    k3 = k.astype(jnp.bfloat16).reshape(Bt, N, C)
    v3 = v.astype(jnp.bfloat16).reshape(Bt, N, C)

    # Per-batch k^T v (contract over tokens) -> (Bt, C, C); mask_ref holds
    # scale * block_diag(per-head) so select + scale collapse to one multiply.
    attn = jnp.einsum("bnc,bnd->bcd", k3, v3, preferred_element_type=jnp.float32)
    attn = attn * mask_ref[...]                                            # (Bt, C, C) f32

    # Algebraic folding: out = q @ attn @ Wproj + b = x @ (Wq @ attn @ Wproj) + b.
    # The (C, C) chain is per-batch and costs ~2*Bt*C^3 FLOPs (negligible vs. the
    # rows-M matmuls), so it is kept in f32 for accuracy.
    attn_p = jnp.dot(attn.reshape(Bt * C, C), wproj_ref[...],
                     preferred_element_type=jnp.float32).reshape(Bt, C, C)
    wq_b = jnp.broadcast_to(wq_ref[...][None], (Bt, C, C))
    w_eff = jnp.einsum("bcd,bde->bce", wq_b, attn_p,
                       preferred_element_type=jnp.float32)                 # (Bt, C, C)
    w_eff = w_eff.astype(jnp.bfloat16)

    # Single rows-M output matmul: out = x @ W_eff + b.
    x3 = x_bf.reshape(Bt, N, C)
    out = jnp.einsum("bnc,bcd->bnd", x3, w_eff,
                     preferred_element_type=jnp.float32)                   # (Bt, N, C)
    out = out.reshape(Bt * N, C) + bproj_ref[...]
    o_ref[...] = out.astype(o_ref.dtype)


def _tpu_vmem_and_cores():
    """Returns (scoped VMEM limit to request, TensorCores per chip)."""
    try:
        vmem_phys = int(pltpu.get_tpu_info().vmem_capacity_bytes)
    except Exception:
        vmem_phys = 64 * 1024 * 1024            # conservative (v7x per-TC) fallback
    vmem_limit = min((vmem_phys * 3) // 4, 100 * 1024 * 1024)
    try:
        kind = jax.devices()[0].device_kind.lower()
    except Exception:
        kind = ""
    # v5e / v6e have a single TensorCore per chip; v4 / v5p / v7x expose two.
    single_tc = any(t in kind for t in ("v5e", "v5 lite", "v5lite",
                                        "v6e", "v6 lite", "v6lite"))
    num_cores = 1 if single_tc else 2
    return vmem_limit, num_cores


def _pick_batch_block(B, N, *, max_rows, num_cores):
    """Largest Bt dividing B with Bt*N <= max_rows. On multi-TC chips, keep the
    number of grid steps a multiple of the core count (balanced megacore split);
    on single-TC chips grid=1 is allowed (fewer, bigger steps win)."""
    best = 1
    for bt in range(1, B + 1):
        if B % bt:
            continue
        if bt > 1 and bt * N > max_rows:
            continue
        steps = B // bt
        if num_cores > 1 and B >= num_cores and steps % num_cores != 0:
            continue
        best = max(best, bt)
    return best


def prepare_linear_attn_params(wq, wkv, wproj, bproj, *, num_heads):
    """One-time precompute of kernel operands (hoisted out of the per-call path):
    bf16 k/v weights, f32 q/proj weights, 2-D bias, scale * block-diag mask."""
    C = wq.shape[0]
    assert C % num_heads == 0
    head_dim = C // num_heads
    scale = head_dim ** (-0.5)

    params = dict(
        wk=wkv[:, :C].astype(jnp.bfloat16),                  # (C, C)
        wv=wkv[:, C:].astype(jnp.bfloat16),                  # (C, C)
        wq=wq.astype(jnp.float32),                           # (C, C)
        wproj=wproj.astype(jnp.float32),                     # (C, C)
        bproj=bproj.reshape(1, C).astype(jnp.float32),       # (1, C)
    )
    row_h = jnp.arange(C)[:, None] // head_dim
    col_h = jnp.arange(C)[None, :] // head_dim
    params["mask"] = (row_h == col_h).astype(jnp.float32) * scale   # (C, C)
    return params


def linear_attn(x, params, *, batch_block=None):
    """x: (B, N, C) float32. params: output of prepare_linear_attn_params."""
    B, N, C = x.shape
    vmem_limit, num_cores = _tpu_vmem_and_cores()

    # VMEM-budget-driven rows-per-step: double-buffered f32 x/out slabs plus the
    # kernel's own bf16/f32 temporaries; leave ~half the scoped limit as headroom.
    bytes_per_row = C * (4 * 2 * 2      # x slab + out slab, f32, x2 buffers
                         + 2            # x bf16 copy
                         + 4 + 4        # k, v f32 dot results
                         + 2 + 2        # k, v bf16
                         + 4)           # out f32
    max_rows = max(N, (vmem_limit // 2) // bytes_per_row)

    Bt = batch_block or _pick_batch_block(B, N, max_rows=max_rows, num_cores=num_cores)
    assert B % Bt == 0
    grid = (B // Bt,)
    rows = Bt * N

    x2d = x.reshape(B * N, C)   # free: collapses leading dims only

    kernel = functools.partial(_linear_attn_kernel, batch_block=Bt, seq_len=N)

    out2d = pl.pallas_call(
        kernel,
        out_shape=jax.ShapeDtypeStruct((B * N, C), x.dtype),
        grid_spec=pltpu.PrefetchScalarGridSpec(
            num_scalar_prefetch=0,
            grid=grid,
            in_specs=[
                pl.BlockSpec((rows, C), lambda i: (i, 0)),   # x slab (Bt*N, C)
                pl.BlockSpec((C, C), lambda i: (0, 0)),      # Wk (bf16)
                pl.BlockSpec((C, C), lambda i: (0, 0)),      # Wv (bf16)
                pl.BlockSpec((C, C), lambda i: (0, 0)),      # Wq (f32, folded chain)
                pl.BlockSpec((C, C), lambda i: (0, 0)),      # Wproj (f32, folded chain)
                pl.BlockSpec((1, C), lambda i: (0, 0)),      # bproj
                pl.BlockSpec((C, C), lambda i: (0, 0)),      # scale * block-diag mask
            ],
            out_specs=pl.BlockSpec((rows, C), lambda i: (i, 0)),
        ),
        compiler_params=pltpu.CompilerParams(
            dimension_semantics=("parallel",),
            vmem_limit_bytes=vmem_limit,
        ),
    )(x2d, params["wk"], params["wv"], params["wq"], params["wproj"],
      params["bproj"], params["mask"])

    return out2d.reshape(B, N, C)


def _trunc_normal(key, shape, std=0.02):
    # matches trunc_normal_(std=0.02): truncated to +/- 2 std
    return jax.random.truncated_normal(key, -2.0, 2.0, shape, jnp.float32) * std


def _reference(x, wq, wkv, wproj, bproj, num_heads):
    B, N, C = x.shape
    d = C // num_heads
    scale = d ** (-0.5)
    q = (x @ wq).reshape(B, N, num_heads, d).transpose(0, 2, 1, 3)        # (B,H,N,d)
    kv = (x @ wkv).reshape(B, N, 2, num_heads, d).transpose(2, 0, 3, 1, 4)
    k, v = kv[0], kv[1]                                                   # (B,H,N,d)
    attn = jnp.einsum("bhnd,bhne->bhde", k, v) * scale                    # (B,H,d,d)
    out = jnp.einsum("bhnd,bhde->bhne", q, attn)                          # (B,H,N,d)
    out = out.transpose(0, 2, 1, 3).reshape(B, N, C)
    return out @ wproj + bproj


if __name__ == "__main__":
    # Small shapes consistent with the module: dim=32, num_heads=8, H=W=8 -> N=64, B=4.
    B, Himg, Wimg, dim, num_heads = 4, 8, 8, 32, 8
    N = Himg * Wimg

    key = jax.random.PRNGKey(0)
    kx, kq, kkv, kp = jax.random.split(key, 4)

    x = jax.random.normal(kx, (B, N, dim), jnp.float32)

    # Parameters (deterministic, trunc_normal std=0.02), stored as (in, out).
    wq = _trunc_normal(kq, (dim, dim))
    wkv = _trunc_normal(kkv, (dim, 2 * dim))
    wproj = _trunc_normal(kp, (dim, dim))
    bproj = jnp.zeros((dim,), jnp.float32)   # nn.init.constant_(bias, 0)

    params = prepare_linear_attn_params(wq, wkv, wproj, bproj, num_heads=num_heads)
    out = linear_attn(x, params)
    out = jax.block_until_ready(out)

    ref = _reference(x, wq, wkv, wproj, bproj, num_heads)
    assert out.shape == (B, N, dim)
    # bf16 MXU operands + folded-weight bf16 rounding -> compare vs f32 reference
    # with bf16-level tolerance.
    max_diff = float(jnp.max(jnp.abs(out - ref)))
    assert jnp.allclose(out, ref, rtol=3e-2, atol=1e-3), \
        f"mismatch vs reference (max abs diff {max_diff})"

    print("KERNEL_OK")
</pallas_src>

<mosaic_0001>
module attributes {stable_mosaic.version = 11 : i64} {
  func.func @_linear_attn_kernel(%arg0: i32, %arg1: memref<128x32xf32, #tpu.memory_space<vmem>>, %arg2: memref<32x32xbf16, #tpu.memory_space<vmem>>, %arg3: memref<32x32xbf16, #tpu.memory_space<vmem>>, %arg4: memref<32x32xf32, #tpu.memory_space<vmem>>, %arg5: memref<32x32xf32, #tpu.memory_space<vmem>>, %arg6: memref<1x32xf32, #tpu.memory_space<vmem>>, %arg7: memref<32x32xf32, #tpu.memory_space<vmem>>, %arg8: memref<128x32xf32, #tpu.memory_space<vmem>>) attributes {dimension_semantics = [#tpu.dimension_semantics<parallel>], iteration_bounds = array<i64: 2>, scalar_prefetch = 0 : i64, scratch_operands = 0 : i64, tpu.core_type = #tpu.core_type<tc>, window_params = [{transform_indices = @transform_0, window_bounds = array<i64: 128, 32>}, {pipeline_mode = #tpu.pipeline_mode<synchronous>, transform_indices = @transform_1, window_bounds = array<i64: 32, 32>}, {pipeline_mode = #tpu.pipeline_mode<synchronous>, transform_indices = @transform_2, window_bounds = array<i64: 32, 32>}, {pipeline_mode = #tpu.pipeline_mode<synchronous>, transform_indices = @transform_3, window_bounds = array<i64: 32, 32>}, {pipeline_mode = #tpu.pipeline_mode<synchronous>, transform_indices = @transform_4, window_bounds = array<i64: 32, 32>}, {pipeline_mode = #tpu.pipeline_mode<synchronous>, transform_indices = @transform_5, window_bounds = array<i64: 1, 32>}, {pipeline_mode = #tpu.pipeline_mode<synchronous>, transform_indices = @transform_6, window_bounds = array<i64: 32, 32>}, {transform_indices = @transform_7, window_bounds = array<i64: 128, 32>}]} {
    %c0 = arith.constant 0 : index
    %c0_0 = arith.constant 0 : index
    %0 = vector.load %arg1[%c0, %c0_0] : memref<128x32xf32, #tpu.memory_space<vmem>>, vector<128x32xf32>
    %1 = arith.truncf %0 : vector<128x32xf32> to vector<128x32xbf16>
    %c0_1 = arith.constant 0 : index
    %c0_2 = arith.constant 0 : index
    %2 = vector.load %arg2[%c0_1, %c0_2] : memref<32x32xbf16, #tpu.memory_space<vmem>>, vector<32x32xbf16>
    %cst = arith.constant dense<0.000000e+00> : vector<128x32xf32>
    %3 = tpu.matmul %1, %2, %cst {dimension_numbers = #tpu.dot_dimension_numbers<[1], [0], [0], [1], [0, 0, 1, 1], [], []>} : vector<128x32xbf16>, vector<32x32xbf16>, vector<128x32xf32> -> vector<128x32xf32>
    %c0_3 = arith.constant 0 : index
    %c0_4 = arith.constant 0 : index
    %4 = vector.load %arg3[%c0_3, %c0_4] : memref<32x32xbf16, #tpu.memory_space<vmem>>, vector<32x32xbf16>
    %cst_5 = arith.constant dense<0.000000e+00> : vector<128x32xf32>
    %5 = tpu.matmul %1, %4, %cst_5 {dimension_numbers = #tpu.dot_dimension_numbers<[1], [0], [0], [1], [0, 0, 1, 1], [], []>} : vector<128x32xbf16>, vector<32x32xbf16>, vector<128x32xf32> -> vector<128x32xf32>
    %6 = arith.truncf %3 : vector<128x32xf32> to vector<128x32xbf16>
    %7 = vector.shape_cast %6 : vector<128x32xbf16> to vector<2x64x32xbf16>
    %8 = arith.truncf %5 : vector<128x32xf32> to vector<128x32xbf16>
    %9 = vector.shape_cast %8 : vector<128x32xbf16> to vector<2x64x32xbf16>
    "tpu.trace_start"() <{level = 10 : i32, message = "bnc,bnd->bcd"}> : () -> ()
    %cst_6 = arith.constant dense<0.000000e+00> : vector<2x32x32xf32>
    %10 = tpu.matmul %7, %9, %cst_6 {dimension_numbers = #tpu.dot_dimension_numbers<[1], [1], [2], [2], [0, 0, 0, 2, 1, 2], [0], [0]>} : vector<2x64x32xbf16>, vector<2x64x32xbf16>, vector<2x32x32xf32> -> vector<2x32x32xf32>
    "tpu.trace_stop"() : () -> ()
    %c0_7 = arith.constant 0 : index
    %c0_8 = arith.constant 0 : index
    %11 = vector.load %arg7[%c0_7, %c0_8] : memref<32x32xf32, #tpu.memory_space<vmem>>, vector<32x32xf32>
    %12 = vector.shape_cast %11 : vector<32x32xf32> to vector<1x32x32xf32>
    %13 = vector.broadcast %12 : vector<1x32x32xf32> to vector<2x32x32xf32>
    %14 = arith.mulf %10, %13 : vector<2x32x32xf32>
    %15 = vector.shape_cast %14 : vector<2x32x32xf32> to vector<64x32xf32>
    %c0_9 = arith.constant 0 : index
    %c0_10 = arith.constant 0 : index
    %16 = vector.load %arg5[%c0_9, %c0_10] : memref<32x32xf32, #tpu.memory_space<vmem>>, vector<32x32xf32>
    %cst_11 = arith.constant dense<0.000000e+00> : vector<64x32xf32>
    %17 = tpu.matmul %15, %16, %cst_11 {dimension_numbers = #tpu.dot_dimension_numbers<[1], [0], [0], [1], [0, 0, 1, 1], [], []>} : vector<64x32xf32>, vector<32x32xf32>, vector<64x32xf32> -> vector<64x32xf32>
    %18 = vector.shape_cast %17 : vector<64x32xf32> to vector<2x32x32xf32>
    %c0_12 = arith.constant 0 : index
    %c0_13 = arith.constant 0 : index
    %19 = vector.load %arg4[%c0_12, %c0_13] : memref<32x32xf32, #tpu.memory_space<vmem>>, vector<32x32xf32>
    %20 = vector.shape_cast %19 : vector<32x32xf32> to vector<1x32x32xf32>
    %21 = vector.shape_cast %20 : vector<1x32x32xf32> to vector<1x32x32xf32>
    %22 = vector.broadcast %21 : vector<1x32x32xf32> to vector<2x32x32xf32>
    "tpu.trace_start"() <{level = 10 : i32, message = "bcd,bde->bce"}> : () -> ()
    %cst_14 = arith.constant dense<0.000000e+00> : vector<2x32x32xf32>
    %23 = tpu.matmul %22, %18, %cst_14 {dimension_numbers = #tpu.dot_dimension_numbers<[2], [1], [1], [2], [0, 0, 0, 1, 1, 2], [0], [0]>} : vector<2x32x32xf32>, vector<2x32x32xf32>, vector<2x32x32xf32> -> vector<2x32x32xf32>
    "tpu.trace_stop"() : () -> ()
    %24 = arith.truncf %23 : vector<2x32x32xf32> to vector<2x32x32xbf16>
    %25 = vector.shape_cast %1 : vector<128x32xbf16> to vector<2x64x32xbf16>
    "tpu.trace_start"() <{level = 10 : i32, message = "bnc,bcd->bnd"}> : () -> ()
    %cst_15 = arith.constant dense<0.000000e+00> : vector<2x64x32xf32>
    %26 = tpu.matmul %25, %24, %cst_15 {dimension_numbers = #tpu.dot_dimension_numbers<[2], [1], [1], [2], [0, 0, 0, 1, 1, 2], [0], [0]>} : vector<2x64x32xbf16>, vector<2x32x32xbf16>, vector<2x64x32xf32> -> vector<2x64x32xf32>
    "tpu.trace_stop"() : () -> ()
    %27 = vector.shape_cast %26 : vector<2x64x32xf32> to vector<128x32xf32>
    %c0_16 = arith.constant 0 : index
    %c0_17 = arith.constant 0 : index
    %28 = vector.load %arg6[%c0_16, %c0_17] : memref<1x32xf32, #tpu.memory_space<vmem>>, vector<1x32xf32>
    %29 = vector.broadcast %28 : vector<1x32xf32> to vector<128x32xf32>
    %30 = arith.addf %27, %29 : vector<128x32xf32>
    %c0_18 = arith.constant 0 : index
    %c0_19 = arith.constant 0 : index
    %31 = vector.load %arg8[%c0_18, %c0_19] : memref<128x32xf32, #tpu.memory_space<vmem>>, vector<128x32xf32>
    tpu.vector_store %arg8[%c0_18, %c0_19], %30 {strides = array<i32>} : memref<128x32xf32, #tpu.memory_space<vmem>>, vector<128x32xf32>,
    return
  }
  func.func @transform_0(%arg0: i32) -> (i32, i32) {
    %c0_i32 = arith.constant 0 : i32
    %c0_i32_0 = arith.constant 0 : i32
    return %arg0, %c0_i32 : i32, i32
  }
  func.func @transform_1(%arg0: i32) -> (i32, i32) {
    %c0_i32 = arith.constant 0 : i32
    %c0_i32_0 = arith.constant 0 : i32
    %c0_i32_1 = arith.constant 0 : i32
    return %c0_i32, %c0_i32_0 : i32, i32
  }
  func.func @transform_2(%arg0: i32) -> (i32, i32) {
    %c0_i32 = arith.constant 0 : i32
    %c0_i32_0 = arith.constant 0 : i32
    %c0_i32_1 = arith.constant 0 : i32
    return %c0_i32, %c0_i32_0 : i32, i32
  }
  func.func @transform_3(%arg0: i32) -> (i32, i32) {
    %c0_i32 = arith.constant 0 : i32
    %c0_i32_0 = arith.constant 0 : i32
    %c0_i32_1 = arith.constant 0 : i32
    return %c0_i32, %c0_i32_0 : i32, i32
  }
  func.func @transform_4(%arg0: i32) -> (i32, i32) {
    %c0_i32 = arith.constant 0 : i32
    %c0_i32_0 = arith.constant 0 : i32
    %c0_i32_1 = arith.constant 0 : i32
    return %c0_i32, %c0_i32_0 : i32, i32
  }
  func.func @transform_5(%arg0: i32) -> (i32, i32) {
    %c0_i32 = arith.constant 0 : i32
    %c0_i32_0 = arith.constant 0 : i32
    %c0_i32_1 = arith.constant 0 : i32
    return %c0_i32, %c0_i32_0 : i32, i32
  }
  func.func @transform_6(%arg0: i32) -> (i32, i32) {
    %c0_i32 = arith.constant 0 : i32
    %c0_i32_0 = arith.constant 0 : i32
    %c0_i32_1 = arith.constant 0 : i32
    return %c0_i32, %c0_i32_0 : i32, i32
  }
  func.func @transform_7(%arg0: i32) -> (i32, i32) {
    %c0_i32 = arith.constant 0 : i32
    %c0_i32_0 = arith.constant 0 : i32
    return %arg0, %c0_i32 : i32, i32
  }
}

</mosaic_0001>

<llo_original>
// kernel: tpu_custom_call.1
$region0: #{tpu_custom_call.1}
  #allocation0 [shape = 'u32[]', space=smem, size = 0x4, offset = 0x4, fixed_abs, tag = 'smem constant byte address 0x4 - core index']
  #allocation1 [shape = 'u32[144,128]{1,0:T(1,128)}', space=vmem, size = 0x12000, scoped, tag = 'internal scratch']
  %s0 = inlined_call_operand.vmem [shape: f32[256,32], index: 0, kind: input, shape index: {}]
  %s1 = inlined_call_operand.vmem [shape: bf16[32,32], index: 1, kind: input, shape index: {}]
  %s2 = inlined_call_operand.vmem [shape: bf16[32,32], index: 2, kind: input, shape index: {}]
  %s3 = inlined_call_operand.vmem [shape: f32[32,32], index: 3, kind: input, shape index: {}]
  %s4 = inlined_call_operand.vmem [shape: f32[32,32], index: 4, kind: input, shape index: {}]
  %s5 = inlined_call_operand.vmem [shape: f32[1,32], index: 5, kind: input, shape index: {}]
  %s6 = inlined_call_operand.vmem [shape: f32[32,32], index: 6, kind: input, shape index: {}]
  %s7 = inlined_call_operand.vmem [shape: f32[256,32], index: 7, kind: output, shape index: {}]
  %s8 = sld [smem:[#allocation0]]
  $region61: #{tpu_custom_call.1} parent=0
    _
  %s10 = ssub.s32 1, %s8
  %s11 = scalar_select 0, %s10, %s8
  loop: start=0, step=1, limit=4
  $region2: #{tpu_custom_call.1} parent=0 // loop_pre_header
    _
  $region3: #{tpu_custom_call.1} parent=0 // loop_header
    %s13 = sphi 0, %s17
    %p14 = scmp.ge.s32.totalorder %s13, 4
    %s23 = sphi 0, %s25
    %s26 = sphi 0, %s23
    %s27 = sphi 0, %s26
    %s43 = sphi 0, %s27
    %s47 = sphi 0, %s47
    %s49 = sphi 0, %s47
    %s50 = sphi 0, %s49
    %s64 = sphi 0, %s50
    %s68 = sphi 0, %s68
    %s70 = sphi 0, %s68
    %s71 = sphi 0, %s70
    %s85 = sphi 0, %s71
    %s89 = sphi 0, %s89
    %s91 = sphi 0, %s89
    %s92 = sphi 0, %s91
    %s106 = sphi 0, %s92
    %s110 = sphi 0, %s110
    %s112 = sphi 0, %s110
    %s113 = sphi 0, %s112
    %s127 = sphi 0, %s113
    %s131 = sphi 0, %s131
    %s133 = sphi 0, %s131
    %s134 = sphi 0, %s133
    %s148 = sphi 0, %s134
    %s152 = sphi 0, %s152
    %s154 = sphi 0, %s152
    %s155 = sphi 0, %s154
    %s169 = sphi 0, %s155
    %s175 = sphi 0, %s177
    %s178 = sphi 0, %s175
    %s179 = sphi 0, %s178
    %s195 = sphi 0, %s179
  $region4: #{tpu_custom_call.1} parent=0 // loop_header_branch
    %16 = sbr.rel (%p14) target = $region8
  $region5: #{tpu_custom_call.1} parent=0 // loop_body
    %s18 = ssub.s32 %s13, 1
    %s19 = ssub.s32 %s13, 2
    %s20 = sadd.s32 %s13, 1
    %s21 = ssub.s32 %s13, %s20
    %p22 = scmp.eq.s32.totalorder %s21, 0
    %s24 = sadd.s32 %s23, 1
    %s25 = scalar_select %p22, %s23, %s24
    %p28 = pneg %p22
    %p29 = scmp.eq.s32.totalorder %s13, 1
    %p30 = por %p28, %p29
    %p31 = scmp.ne.s32.totalorder %s23, %s26
    %p32 = scmp.eq.s32.totalorder %s13, 0
    %p33 = por %p31, %p32
    %p34 = scmp.ne.s32.totalorder %s23, %s26
    %p35 = scmp.eq.s32.totalorder %s18, 1
    %p36 = por %p34, %p35
    %p37 = scmp.ne.s32.totalorder %s26, %s27
    %p38 = scmp.eq.s32.totalorder %s18, 0
    %p39 = por %p37, %p38
    %p40 = scmp.ne.s32.totalorder %s26, %s27
    %p41 = scmp.eq.s32.totalorder %s19, 1
    %p42 = por %p40, %p41
    %p44 = scmp.ne.s32.totalorder %s27, %s43
    %p45 = scmp.eq.s32.totalorder %s19, 0
    %p46 = por %p44, %p45
    %s48 = sadd.s32 %s47, 1
    %p51 = scmp.eq.s32.totalorder %s13, 1
    %p52 = scmp.ne.s32.totalorder %s47, %s49
    %p53 = scmp.eq.s32.totalorder %s13, 0
    %p54 = por %p52, %p53
    %p55 = scmp.ne.s32.totalorder %s47, %s49
    %p56 = scmp.eq.s32.totalorder %s18, 1
    %p57 = por %p55, %p56
    %p58 = scmp.ne.s32.totalorder %s49, %s50
    %p59 = scmp.eq.s32.totalorder %s18, 0
    %p60 = por %p58, %p59
    %p61 = scmp.ne.s32.totalorder %s49, %s50
    %p62 = scmp.eq.s32.totalorder %s19, 1
    %p63 = por %p61, %p62
    %p65 = scmp.ne.s32.totalorder %s50, %s64
    %p66 = scmp.eq.s32.totalorder %s19, 0
    %p67 = por %p65, %p66
    %s69 = sadd.s32 %s68, 1
    %p72 = scmp.eq.s32.totalorder %s13, 1
    %p73 = scmp.ne.s32.totalorder %s68, %s70
    %p74 = scmp.eq.s32.totalorder %s13, 0
    %p75 = por %p73, %p74
    %p76 = scmp.ne.s32.totalorder %s68, %s70
    %p77 = scmp.eq.s32.totalorder %s18, 1
    %p78 = por %p76, %p77
    %p79 = scmp.ne.s32.totalorder %s70, %s71
    %p80 = scmp.eq.s32.totalorder %s18, 0
    %p81 = por %p79, %p80
    %p82 = scmp.ne.s32.totalorder %s70, %s71
    %p83 = scmp.eq.s32.totalorder %s19, 1
    %p84 = por %p82, %p83
    %p86 = scmp.ne.s32.totalorder %s71, %s85
    %p87 = scmp.eq.s32.totalorder %s19, 0
    %p88 = por %p86, %p87
    %s90 = sadd.s32 %s89, 1
    %p93 = scmp.eq.s32.totalorder %s13, 1
    %p94 = scmp.ne.s32.totalorder %s89, %s91
    %p95 = scmp.eq.s32.totalorder %s13, 0
    %p96 = por %p94, %p95
    %p97 = scmp.ne.s32.totalorder %s89, %s91
    %p98 = scmp.eq.s32.totalorder %s18, 1
    %p99 = por %p97, %p98
    %p100 = scmp.ne.s32.totalorder %s91, %s92
    %p101 = scmp.eq.s32.totalorder %s18, 0
    %p102 = por %p100, %p101
    %p103 = scmp.ne.s32.totalorder %s91, %s92
    %p104 = scmp.eq.s32.totalorder %s19, 1
    %p105 = por %p103, %p104
    %p107 = scmp.ne.s32.totalorder %s92, %s106
    %p108 = scmp.eq.s32.totalorder %s19, 0
    %p109 = por %p107, %p108
    %s111 = sadd.s32 %s110, 1
    %p114 = scmp.eq.s32.totalorder %s13, 1
    %p115 = scmp.ne.s32.totalorder %s110, %s112
    %p116 = scmp.eq.s32.totalorder %s13, 0
    %p117 = por %p115, %p116
    %p118 = scmp.ne.s32.totalorder %s110, %s112
    %p119 = scmp.eq.s32.totalorder %s18, 1
    %p120 = por %p118, %p119
    %p121 = scmp.ne.s32.totalorder %s112, %s113
    %p122 = scmp.eq.s32.totalorder %s18, 0
    %p123 = por %p121, %p122
    %p124 = scmp.ne.s32.totalorder %s112, %s113
    %p125 = scmp.eq.s32.totalorder %s19, 1
    %p126 = por %p124, %p125
    %p128 = scmp.ne.s32.totalorder %s113, %s127
    %p129 = scmp.eq.s32.totalorder %s19, 0
    %p130 = por %p128, %p129
    %s132 = sadd.s32 %s131, 1
    %p135 = scmp.eq.s32.totalorder %s13, 1
    %p136 = scmp.ne.s32.totalorder %s131, %s133
    %p137 = scmp.eq.s32.totalorder %s13, 0
    %p138 = por %p136, %p137
    %p139 = scmp.ne.s32.totalorder %s131, %s133
    %p140 = scmp.eq.s32.totalorder %s18, 1
    %p141 = por %p139, %p140
    %p142 = scmp.ne.s32.totalorder %s133, %s134
    %p143 = scmp.eq.s32.totalorder %s18, 0
    %p144 = por %p142, %p143
    %p145 = scmp.ne.s32.totalorder %s133, %s134
    %p146 = scmp.eq.s32.totalorder %s19, 1
    %p147 = por %p145, %p146
    %p149 = scmp.ne.s32.totalorder %s134, %s148
    %p150 = scmp.eq.s32.totalorder %s19, 0
    %p151 = por %p149, %p150
    %s153 = sadd.s32 %s152, 1
    %p156 = scmp.eq.s32.totalorder %s13, 1
    %p157 = scmp.ne.s32.totalorder %s152, %s154
    %p158 = scmp.eq.s32.totalorder %s13, 0
    %p159 = por %p157, %p158
    %p160 = scmp.ne.s32.totalorder %s152, %s154
    %p161 = scmp.eq.s32.totalorder %s18, 1
    %p162 = por %p160, %p161
    %p163 = scmp.ne.s32.totalorder %s154, %s155
    %p164 = scmp.eq.s32.totalorder %s18, 0
    %p165 = por %p163, %p164
    %p166 = scmp.ne.s32.totalorder %s154, %s155
    %p167 = scmp.eq.s32.totalorder %s19, 1
    %p168 = por %p166, %p167
    %p170 = scmp.ne.s32.totalorder %s155, %s169
    %p171 = scmp.eq.s32.totalorder %s19, 0
    %p172 = por %p170, %p171
    %s173 = ssub.s32 %s13, %s20
    %p174 = scmp.eq.s32.totalorder %s173, 0
    %s176 = sadd.s32 %s175, 1
    %s177 = scalar_select %p174, %s175, %s176
    %p180 = pneg %p174
    %p181 = scmp.eq.s32.totalorder %s13, 1
    %p182 = por %p180, %p181
    %p183 = scmp.ne.s32.totalorder %s175, %s178
    %p184 = scmp.eq.s32.totalorder %s13, 0
    %p185 = por %p183, %p184
    %p186 = scmp.ne.s32.totalorder %s175, %s178
    %p187 = scmp.eq.s32.totalorder %s18, 1
    %p188 = por %p186, %p187
    %p189 = scmp.ne.s32.totalorder %s178, %s179
    %p190 = scmp.eq.s32.totalorder %s18, 0
    %p191 = por %p189, %p190
    %p192 = scmp.ne.s32.totalorder %s178, %s179
    %p193 = scmp.eq.s32.totalorder %s19, 1
    %p194 = por %p192, %p193
    %p196 = scmp.ne.s32.totalorder %s179, %s195
    %p197 = scmp.eq.s32.totalorder %s19, 0
    %p198 = por %p196, %p197
    %p199 = scmp.le.s32.totalorder 1, %s13
    %p200 = scmp.lt.s32.totalorder %s13, 3
    %p201 = pnand %p199, %p200
    %p202 = pneg %p201
    // Predicated region
    $region9: #{tpu_custom_call.1} parent=5 // pred_check
      _
    $region10: #{tpu_custom_call.1} parent=5 // pred_check_branch
      %204 = sbr.rel (%p201) target = $region12
    $region11: #{tpu_custom_call.1} parent=5 // pred_region
      %s205 = ssub.s32 %s13, 1
      // Predicated region
      $region13: #{tpu_custom_call.1} parent=11 // pred_check
        %p206 = pneg %p60
      $region14: #{tpu_custom_call.1} parent=11 // pred_check_branch
        %208 = sbr.rel (%p206) target = $region16
      $region15: #{tpu_custom_call.1} parent=11 // pred_region
        _
      $region16: #{tpu_custom_call.1} parent=11 // pred_fallthru
        _
      // Predicated region
      $region17: #{tpu_custom_call.1} parent=11 // pred_check
        %p209 = pneg %p81
      $region18: #{tpu_custom_call.1} parent=11 // pred_check_branch
        %211 = sbr.rel (%p209) target = $region20
      $region19: #{tpu_custom_call.1} parent=11 // pred_region
        _
      $region20: #{tpu_custom_call.1} parent=11 // pred_fallthru
        _
      // Predicated region
      $region21: #{tpu_custom_call.1} parent=11 // pred_check
        %p212 = pneg %p102
      $region22: #{tpu_custom_call.1} parent=11 // pred_check_branch
        %214 = sbr.rel (%p212) target = $region24
      $region23: #{tpu_custom_call.1} parent=11 // pred_region
        _
      $region24: #{tpu_custom_call.1} parent=11 // pred_fallthru
        _
      // Predicated region
      $region25: #{tpu_custom_call.1} parent=11 // pred_check
        %p215 = pneg %p123
      $region26: #{tpu_custom_call.1} parent=11 // pred_check_branch
        %217 = sbr.rel (%p215) target = $region28
      $region27: #{tpu_custom_call.1} parent=11 // pred_region
        _
      $region28: #{tpu_custom_call.1} parent=11 // pred_fallthru
        _
      // Predicated region
      $region29: #{tpu_custom_call.1} parent=11 // pred_check
        %p218 = pneg %p144
      $region30: #{tpu_custom_call.1} parent=11 // pred_check_branch
        %220 = sbr.rel (%p218) target = $region32
      $region31: #{tpu_custom_call.1} parent=11 // pred_region
        _
      $region32: #{tpu_custom_call.1} parent=11 // pred_fallthru
        _
      // Predicated region
      $region33: #{tpu_custom_call.1} parent=11 // pred_check
        %p221 = pneg %p165
      $region34: #{tpu_custom_call.1} parent=11 // pred_check_branch
        %223 = sbr.rel (%p221) target = $region36
      $region35: #{tpu_custom_call.1} parent=11 // pred_region
        _
      $region36: #{tpu_custom_call.1} parent=11 // pred_fallthru
        _
    $region12: #{tpu_custom_call.1} parent=5 // pred_fallthru
      _
    %p224 = scmp.lt.s32.totalorder %s13, 2
    // Predicated region
    $region37: #{tpu_custom_call.1} parent=5 // pred_check
      %p225 = pneg %p224
    $region38: #{tpu_custom_call.1} parent=5 // pred_check_branch
      %227 = sbr.rel (%p225) target = $region40
    $region39: #{tpu_custom_call.1} parent=5 // pred_region
      // Predicated region
      $region41: #{tpu_custom_call.1} parent=39 // pred_check
        %p228 = pneg %p33
      $region42: #{tpu_custom_call.1} parent=39 // pred_check_branch
        %230 = sbr.rel (%p228) target = $region44
      $region43: #{tpu_custom_call.1} parent=39 // pred_region
        %s231 = smul.u32 16, %s13
        %p232 = scmp.lt.s32.totalorder %s231, 31
        %s233 = scalar_select %p232, %s231, 31
        %s234 = smul.addr %s233, 8
        %s235 = scalar_lea.vmem %s0, %s234
        %s236 = smul.u32 16, %s13
      $region44: #{tpu_custom_call.1} parent=39 // pred_fallthru
        _
    $region40: #{tpu_custom_call.1} parent=5 // pred_fallthru
      _
    %p237 = scmp.le.s32.totalorder 1, %s13
    %p238 = scmp.lt.s32.totalorder %s13, 3
    %p239 = pnand %p237, %p238
    %p240 = pneg %p239
    // Predicated region
    $region45: #{tpu_custom_call.1} parent=5 // pred_check
      _
    $region46: #{tpu_custom_call.1} parent=5 // pred_check_branch
      %242 = sbr.rel (%p239) target = $region48
    $region47: #{tpu_custom_call.1} parent=5 // pred_region
      %s243 = ssub.s32 %s13, 1
      %s244 = smul.u32 16, %s18
      %p245 = scmp.lt.s32.totalorder %s244, 31
      %s246 = scalar_select %p245, %s244, 31
      %s247 = smul.addr %s246, 8
      %s248 = scalar_lea.vmem %s0, %s247
      %p249 = pneg %p39
      %p250 = pneg %p36
      %p251 = pneg %p60
      %p252 = pneg %p57
      %p253 = pneg %p81
      %p254 = pneg %p78
      %p255 = pneg %p102
      %p256 = pneg %p99
      %p257 = pneg %p123
      %p258 = pneg %p120
      %p259 = pneg %p144
      %p260 = pneg %p141
      %p261 = pneg %p165
      %p262 = pneg %p162
      %p263 = pneg %p191
      %p264 = pneg %p188
      %s265 = smul.u32 16, %s18
      %p266 = scmp.lt.s32.totalorder %s265, 31
      %s267 = scalar_select %p266, %s265, 31
      %s268 = smul.addr %s267, 8
      %s269 = scalar_lea.vmem %s7, %s268
      %s270 = smul.u32 16, %s18
      %p271 = scmp.lt.s32.totalorder %s270, 31
      %s272 = scalar_select %p271, %s270, 31
      %s273 = smul.addr %s272, 8
      %s274 = scalar_lea.vmem %s0, %s273
      %s275 = smul.u32 16, %s18
      %s276 = smul.u32 16, %s18
      %p277 = scmp.lt.s32.totalorder %s276, 31
      %s278 = scalar_select %p277, %s276, 31
      %s279 = smul.addr %s278, 8
      %s280 = scalar_lea.vmem %s7, %s279
      %s281 = smul.u32 16, %s18
      %v283 = vld [vmem:[%s274] sm:$0xff]
      %v284 = vld [vmem:[%s274 + $0x8] sm:$0xff]
      %v285 = vld [vmem:[%s274 + $0x10] sm:$0xff]
      %v286 = vld [vmem:[%s274 + $0x18] sm:$0xff]
      %v287 = vld [vmem:[%s274 + $0x20] sm:$0xff]
      %v288 = vld [vmem:[%s274 + $0x28] sm:$0xff]
      %v289 = vld [vmem:[%s274 + $0x30] sm:$0xff]
      %v290 = vld [vmem:[%s274 + $0x38] sm:$0xff]
      %v291 = vld [vmem:[%s274 + $0x40] sm:$0xff]
      %v292 = vld [vmem:[%s274 + $0x48] sm:$0xff]
      %v293 = vld [vmem:[%s274 + $0x50] sm:$0xff]
      %v294 = vld [vmem:[%s274 + $0x58] sm:$0xff]
      %v295 = vld [vmem:[%s274 + $0x60] sm:$0xff]
      %v296 = vld [vmem:[%s274 + $0x68] sm:$0xff]
      %v297 = vld [vmem:[%s274 + $0x70] sm:$0xff]
      %v298 = vld [vmem:[%s274 + $0x78] sm:$0xff]
      %v299 = vpack.c.bf16 %v284, %v283
      %v300 = vpack.c.bf16 %v286, %v285
      %v301 = vpack.c.bf16 %v288, %v287
      %v302 = vpack.c.bf16 %v290, %v289
      %v303 = vpack.c.bf16 %v292, %v291
      %v304 = vpack.c.bf16 %v294, %v293
      %v305 = vpack.c.bf16 %v296, %v295
      %v306 = vpack.c.bf16 %v298, %v297
      %v307 = vld [vmem:[%s1] sm:$0xf]
      %v308 = vld [vmem:[%s1 + $0x4] sm:$0xf]
      %v309 = vld [vmem:[%s1 + $0x8] sm:$0xf]
      %v310 = vld [vmem:[%s1 + $0xc] sm:$0xf]
      %v315 = vunpack.c.l.b16 %v307
      %v316 = vunpack.c.l.b16 %v308
      %v317 = vunpack.c.l.b16 %v309
      %v318 = vunpack.c.l.b16 %v310
      %v319 = vpack.c.b16 %v316, %v315
      %v320 = vpack.c.b16 %v318, %v317
      %vm323 = vcmask 261120
      %v325 = vsel %vm323, %v299, 0
      %v328 = vsel %vm323, %v300, 0
      %v331 = vsel %vm323, %v301, 0
      %v334 = vsel %vm323, %v302, 0
      %v337 = vsel %vm323, %v303, 0
      %v340 = vsel %vm323, %v304, 0
      %v343 = vsel %vm323, %v305, 0
      %v346 = vsel %vm323, %v306, 0
      %348 = vmatprep.subr.bf16.mxu0 0
      %349 = vmatpush1.bf16.msra.mxu0 0
      %350 = vmatprep.subr.bf16.mxu0 0
      %351 = vmatpush1.bf16.msra.mxu0 0
      %352 = vmatprep.subr.bf16.mxu0 0
      %353 = vmatpush1.bf16.msra.mxu0 0
      %354 = vmatprep.subr.bf16.mxu0 0
      %355 = vmatpush1.bf16.msra.mxu0 0
      %356 = vmatprep.subr.bf16.mxu0 0
      %357 = vmatpush1.bf16.msra.mxu0 0
      %358 = vmatprep.subr.bf16.mxu0 0
      %359 = vmatpush1.bf16.msra.mxu0 0
      %360 = vmatprep.subr.bf16.mxu0 0
      %361 = vmatpush1.bf16.msra.mxu0 %v320
      %362 = vmatprep.subr.bf16.mxu0 0
      %363 = vmatpush1.bf16.msra.mxu0 %v319
      %364 = vmatprep.subr.bf16.mxu0 0
      %365 = vmatpush2.bf16.msra.mxu0 0
      %366 = vmatprep.subr.bf16.mxu0 0
      %367 = vmatpush2.bf16.msra.mxu0 0
      %368 = vmatprep.subr.bf16.mxu0 0
      %369 = vmatpush2.bf16.msra.mxu0 0
      %370 = vmatprep.subr.bf16.mxu0 0
      %371 = vmatpush2.bf16.msra.mxu0 0
      %372 = vmatprep.subr.bf16.mxu0 0
      %373 = vmatpush2.bf16.msra.mxu0 0
      %374 = vmatprep.subr.bf16.mxu0 0
      %375 = vmatpush2.bf16.msra.mxu0 0
      %376 = vmatprep.subr.bf16.mxu0 0
      %377 = vmatpush2.bf16.msra.mxu0 0
      %378 = vmatprep.subr.bf16.mxu0 0
      %379 = vmatpush2.bf16.msra.mxu0 0
      %380 = vmatprep.mubr.bf16.mxu0 0
      %381 = vmatmul.mubr.bf16.gmra.mxu0 %v325
      %v382 = vpop.f32.mrf.mxu0
      %v383 = vadd.f32 0.0, %v382
      %v384 = vpop.f32.mrf.mxu0
      %v385 = vpop.f32.mrf.mxu0
      %v386 = vadd.f32 0.0, %v385
      %v387 = vpop.f32.mrf.mxu0
      %388 = vmatprep.mubr.bf16.mxu0 0
      %389 = vmatmul.mubr.bf16.gmra.mxu0 %v328
      %v390 = vpop.f32.mrf.mxu0
      %v391 = vadd.f32 0.0, %v390
      %v392 = vpop.f32.mrf.mxu0
      %v393 = vpop.f32.mrf.mxu0
      %v394 = vadd.f32 0.0, %v393
      %v395 = vpop.f32.mrf.mxu0
      %396 = vmatprep.mubr.bf16.mxu0 0
      %397 = vmatmul.mubr.bf16.gmra.mxu0 %v331
      %v398 = vpop.f32.mrf.mxu0
      %v399 = vadd.f32 0.0, %v398
      %v400 = vpop.f32.mrf.mxu0
      %v401 = vpop.f32.mrf.mxu0
      %v402 = vadd.f32 0.0, %v401
      %v403 = vpop.f32.mrf.mxu0
      %404 = vmatprep.mubr.bf16.mxu0 0
      %405 = vmatmul.mubr.bf16.gmra.mxu0 %v334
      %v406 = vpop.f32.mrf.mxu0
      %v407 = vadd.f32 0.0, %v406
      %v408 = vpop.f32.mrf.mxu0
      %v409 = vpop.f32.mrf.mxu0
      %v410 = vadd.f32 0.0, %v409
      %v411 = vpop.f32.mrf.mxu0
      %412 = vmatprep.mubr.bf16.mxu0 0
      %413 = vmatmul.mubr.bf16.gmra.mxu0 %v337
      %v414 = vpop.f32.mrf.mxu0
      %v415 = vadd.f32 0.0, %v414
      %v416 = vpop.f32.mrf.mxu0
      %v417 = vpop.f32.mrf.mxu0
      %v418 = vadd.f32 0.0, %v417
      %v419 = vpop.f32.mrf.mxu0
      %420 = vmatprep.mubr.bf16.mxu0 0
      %421 = vmatmul.mubr.bf16.gmra.mxu0 %v340
      %v422 = vpop.f32.mrf.mxu0
      %v423 = vadd.f32 0.0, %v422
      %v424 = vpop.f32.mrf.mxu0
      %v425 = vpop.f32.mrf.mxu0
      %v426 = vadd.f32 0.0, %v425
      %v427 = vpop.f32.mrf.mxu0
      %428 = vmatprep.mubr.bf16.mxu0 0
      %429 = vmatmul.mubr.bf16.gmra.mxu0 %v343
      %v430 = vpop.f32.mrf.mxu0
      %v431 = vadd.f32 0.0, %v430
      %v432 = vpop.f32.mrf.mxu0
      %v433 = vpop.f32.mrf.mxu0
      %v434 = vadd.f32 0.0, %v433
      %v435 = vpop.f32.mrf.mxu0
      %436 = vmatprep.mubr.bf16.mxu0 0
      %437 = vmatmul.mubr.bf16.gmra.mxu0 %v346
      %v438 = vpop.f32.mrf.mxu0
      %v439 = vadd.f32 0.0, %v438
      %v440 = vpop.f32.mrf.mxu0
      %v441 = vpop.f32.mrf.mxu0
      %v442 = vadd.f32 0.0, %v441
      %v443 = vpop.f32.mrf.mxu0
      %444 = vdwg.mxu0
      %v445 = vld [vmem:[%s2] sm:$0xf]
      %v446 = vld [vmem:[%s2 + $0x4] sm:$0xf]
      %v447 = vld [vmem:[%s2 + $0x8] sm:$0xf]
      %v448 = vld [vmem:[%s2 + $0xc] sm:$0xf]
      %v453 = vunpack.c.l.b16 %v445
      %v454 = vunpack.c.l.b16 %v446
      %v455 = vunpack.c.l.b16 %v447
      %v456 = vunpack.c.l.b16 %v448
      %v457 = vpack.c.b16 %v454, %v453
      %v458 = vpack.c.b16 %v456, %v455
      %461 = vmatprep.subr.bf16.mxu0 0
      %462 = vmatpush1.bf16.msra.mxu0 0
      %463 = vmatprep.subr.bf16.mxu0 0
      %464 = vmatpush1.bf16.msra.mxu0 0
      %465 = vmatprep.subr.bf16.mxu0 0
      %466 = vmatpush1.bf16.msra.mxu0 0
      %467 = vmatprep.subr.bf16.mxu0 0
      %468 = vmatpush1.bf16.msra.mxu0 0
      %469 = vmatprep.subr.bf16.mxu0 0
      %470 = vmatpush1.bf16.msra.mxu0 0
      %471 = vmatprep.subr.bf16.mxu0 0
      %472 = vmatpush1.bf16.msra.mxu0 0
      %473 = vmatprep.subr.bf16.mxu0 0
      %474 = vmatpush1.bf16.msra.mxu0 %v458
      %475 = vmatprep.subr.bf16.mxu0 0
      %476 = vmatpush1.bf16.msra.mxu0 %v457
      %477 = vmatprep.subr.bf16.mxu0 0
      %478 = vmatpush2.bf16.msra.mxu0 0
      %479 = vmatprep.subr.bf16.mxu0 0
      %480 = vmatpush2.bf16.msra.mxu0 0
      %481 = vmatprep.subr.bf16.mxu0 0
      %482 = vmatpush2.bf16.msra.mxu0 0
      %483 = vmatprep.subr.bf16.mxu0 0
      %484 = vmatpush2.bf16.msra.mxu0 0
      %485 = vmatprep.subr.bf16.mxu0 0
      %486 = vmatpush2.bf16.msra.mxu0 0
      %487 = vmatprep.subr.bf16.mxu0 0
      %488 = vmatpush2.bf16.msra.mxu0 0
      %489 = vmatprep.subr.bf16.mxu0 0
      %490 = vmatpush2.bf16.msra.mxu0 0
      %491 = vmatprep.subr.bf16.mxu0 0
      %492 = vmatpush2.bf16.msra.mxu0 0
      %493 = vmatprep.mubr.bf16.mxu0 0
      %494 = vmatmul.mubr.bf16.gmra.mxu0 %v325
      %v495 = vpop.f32.mrf.mxu0
      %v496 = vadd.f32 0.0, %v495
      %v497 = vpop.f32.mrf.mxu0
      %v498 = vpop.f32.mrf.mxu0
      %v499 = vadd.f32 0.0, %v498
      %v500 = vpop.f32.mrf.mxu0
      %501 = vmatprep.mubr.bf16.mxu0 0
      %502 = vmatmul.mubr.bf16.gmra.mxu0 %v328
      %v503 = vpop.f32.mrf.mxu0
      %v504 = vadd.f32 0.0, %v503
      %v505 = vpop.f32.mrf.mxu0
      %v506 = vpop.f32.mrf.mxu0
      %v507 = vadd.f32 0.0, %v506
      %v508 = vpop.f32.mrf.mxu0
      %509 = vmatprep.mubr.bf16.mxu0 0
      %510 = vmatmul.mubr.bf16.gmra.mxu0 %v331
      %v511 = vpop.f32.mrf.mxu0
      %v512 = vadd.f32 0.0, %v511
      %v513 = vpop.f32.mrf.mxu0
      %v514 = vpop.f32.mrf.mxu0
      %v515 = vadd.f32 0.0, %v514
      %v516 = vpop.f32.mrf.mxu0
      %517 = vmatprep.mubr.bf16.mxu0 0
      %518 = vmatmul.mubr.bf16.gmra.mxu0 %v334
      %v519 = vpop.f32.mrf.mxu0
      %v520 = vadd.f32 0.0, %v519
      %v521 = vpop.f32.mrf.mxu0
      %v522 = vpop.f32.mrf.mxu0
      %v523 = vadd.f32 0.0, %v522
      %v524 = vpop.f32.mrf.mxu0
      %525 = vmatprep.mubr.bf16.mxu0 0
      %526 = vmatmul.mubr.bf16.gmra.mxu0 %v337
      %v527 = vpop.f32.mrf.mxu0
      %v528 = vadd.f32 0.0, %v527
      %v529 = vpop.f32.mrf.mxu0
      %v530 = vpop.f32.mrf.mxu0
      %v531 = vadd.f32 0.0, %v530
      %v532 = vpop.f32.mrf.mxu0
      %533 = vmatprep.mubr.bf16.mxu0 0
      %534 = vmatmul.mubr.bf16.gmra.mxu0 %v340
      %v535 = vpop.f32.mrf.mxu0
      %v536 = vadd.f32 0.0, %v535
      %v537 = vpop.f32.mrf.mxu0
      %v538 = vpop.f32.mrf.mxu0
      %v539 = vadd.f32 0.0, %v538
      %v540 = vpop.f32.mrf.mxu0
      %541 = vmatprep.mubr.bf16.mxu0 0
      %542 = vmatmul.mubr.bf16.gmra.mxu0 %v343
      %v543 = vpop.f32.mrf.mxu0
      %v544 = vadd.f32 0.0, %v543
      %v545 = vpop.f32.mrf.mxu0
      %v546 = vpop.f32.mrf.mxu0
      %v547 = vadd.f32 0.0, %v546
      %v548 = vpop.f32.mrf.mxu0
      %549 = vmatprep.mubr.bf16.mxu0 0
      %550 = vmatmul.mubr.bf16.gmra.mxu0 %v346
      %v551 = vpop.f32.mrf.mxu0
      %v552 = vadd.f32 0.0, %v551
      %v553 = vpop.f32.mrf.mxu0
      %v554 = vpop.f32.mrf.mxu0
      %v555 = vadd.f32 0.0, %v554
      %v556 = vpop.f32.mrf.mxu0
      %557 = vdwg.mxu0
      %v558 = vpack.c.bf16 %v386, %v383
      %v559 = vpack.c.bf16 %v394, %v391
      %v560 = vpack.c.bf16 %v402, %v399
      %v561 = vpack.c.bf16 %v410, %v407
      %v562 = vpack.c.bf16 %v418, %v415
      %v563 = vpack.c.bf16 %v426, %v423
      %v564 = vpack.c.bf16 %v434, %v431
      %v565 = vpack.c.bf16 %v442, %v439
      %v566 = vpack.c.bf16 %v499, %v496
      %v567 = vpack.c.bf16 %v507, %v504
      %v568 = vpack.c.bf16 %v515, %v512
      %v569 = vpack.c.bf16 %v523, %v520
      %v570 = vpack.c.bf16 %v531, %v528
      %v571 = vpack.c.bf16 %v539, %v536
      %v572 = vpack.c.bf16 %v547, %v544
      %v573 = vpack.c.bf16 %v555, %v552
      %574 = vxpose.xlu0.c.b16.start [1/8] %v558, 128
      %575 = vxpose.xlu0.c.b16.cont [2/8] %v559, 128
      %576 = vxpose.xlu0.c.b16.cont [3/8] %v560, 128
      %577 = vxpose.xlu0.c.b16.cont [4/8] %v561, 128
      %578 = vxpose.xlu0.c.b16.cont [5/8] 0, 128
      %579 = vxpose.xlu0.c.b16.cont [6/8] 0, 128
      %580 = vxpose.xlu0.c.b16.cont [7/8] 0, 128
      %581 = vxpose.xlu0.c.b16.end [8/8] 0, 128
      %v582 = vpop.trf.xlu0
      %v583 = vpop.trf.xlu0
      %v584 = vpop.trf.xlu0
      %v585 = vpop.trf.xlu0
      %v586 = vpop.trf.xlu0
      %v587 = vpop.trf.xlu0
      %v588 = vpop.trf.xlu0
      %v589 = vpop.trf.xlu0
      %vm590 = vcmask 523264
      %v592 = vsel %vm590, %v582, 0
      %v595 = vsel %vm590, %v583, 0
      %597 = vmatprep.subr.bf16.mxu0 0
      %598 = vmatpush1.bf16.msra.mxu0 0
      %599 = vmatprep.subr.bf16.mxu0 0
      %600 = vmatpush1.bf16.msra.mxu0 0
      %601 = vmatprep.subr.bf16.mxu0 0
      %602 = vmatpush1.bf16.msra.mxu0 0
      %603 = vmatprep.subr.bf16.mxu0 0
      %604 = vmatpush1.bf16.msra.mxu0 0
      %605 = vmatprep.subr.bf16.mxu0 0
      %606 = vmatpush1.bf16.msra.mxu0 %v569
      %607 = vmatprep.subr.bf16.mxu0 0
      %608 = vmatpush1.bf16.msra.mxu0 %v568
      %609 = vmatprep.subr.bf16.mxu0 0
      %610 = vmatpush1.bf16.msra.mxu0 %v567
      %611 = vmatprep.subr.bf16.mxu0 0
      %612 = vmatpush1.bf16.msra.mxu0 %v566
      %613 = vmatprep.subr.bf16.mxu0 0
      %614 = vmatpush2.bf16.msra.mxu0 0
      %615 = vmatprep.subr.bf16.mxu0 0
      %616 = vmatpush2.bf16.msra.mxu0 0
      %617 = vmatprep.subr.bf16.mxu0 0
      %618 = vmatpush2.bf16.msra.mxu0 0
      %619 = vmatprep.subr.bf16.mxu0 0
      %620 = vmatpush2.bf16.msra.mxu0 0
      %621 = vmatprep.subr.bf16.mxu0 0
      %622 = vmatpush2.bf16.msra.mxu0 0
      %623 = vmatprep.subr.bf16.mxu0 0
      %624 = vmatpush2.bf16.msra.mxu0 0
      %625 = vmatprep.subr.bf16.mxu0 0
      %626 = vmatpush2.bf16.msra.mxu0 0
      %627 = vmatprep.subr.bf16.mxu0 0
      %628 = vmatpush2.bf16.msra.mxu0 0
      %629 = vmatprep.mubr.bf16.mxu0 0
      %630 = vmatmul.mubr.bf16.gmra.mxu0 %v592
      %v631 = vpop.f32.mrf.mxu0
      %v632 = vadd.f32 0.0, %v631
      %v633 = vpop.f32.mrf.mxu0
      %v634 = vpop.f32.mrf.mxu0
      %v635 = vadd.f32 0.0, %v634
      %v636 = vpop.f32.mrf.mxu0
      %637 = vmatprep.mubr.bf16.mxu0 0
      %638 = vmatmul.mubr.bf16.gmra.mxu0 %v595
      %v639 = vpop.f32.mrf.mxu0
      %v640 = vadd.f32 0.0, %v639
      %v641 = vpop.f32.mrf.mxu0
      %v642 = vpop.f32.mrf.mxu0
      %v643 = vadd.f32 0.0, %v642
      %v644 = vpop.f32.mrf.mxu0
      %645 = vdwg.mxu0
      %646 = vxpose.xlu0.c.b16.start [1/8] %v562, 128
      %647 = vxpose.xlu0.c.b16.cont [2/8] %v563, 128
      %648 = vxpose.xlu0.c.b16.cont [3/8] %v564, 128
      %649 = vxpose.xlu0.c.b16.cont [4/8] %v565, 128
      %650 = vxpose.xlu0.c.b16.cont [5/8] 0, 128
      %651 = vxpose.xlu0.c.b16.cont [6/8] 0, 128
      %652 = vxpose.xlu0.c.b16.cont [7/8] 0, 128
      %653 = vxpose.xlu0.c.b16.end [8/8] 0, 128
      %v654 = vpop.trf.xlu0
      %v655 = vpop.trf.xlu0
      %v656 = vpop.trf.xlu0
      %v657 = vpop.trf.xlu0
      %v658 = vpop.trf.xlu0
      %v659 = vpop.trf.xlu0
      %v660 = vpop.trf.xlu0
      %v661 = vpop.trf.xlu0
      %v663 = vsel %vm590, %v654, 0
      %v666 = vsel %vm590, %v655, 0
      %668 = vmatprep.subr.bf16.mxu0 0
      %669 = vmatpush1.bf16.msra.mxu0 0
      %670 = vmatprep.subr.bf16.mxu0 0
      %671 = vmatpush1.bf16.msra.mxu0 0
      %672 = vmatprep.subr.bf16.mxu0 0
      %673 = vmatpush1.bf16.msra.mxu0 0
      %674 = vmatprep.subr.bf16.mxu0 0
      %675 = vmatpush1.bf16.msra.mxu0 0
      %676 = vmatprep.subr.bf16.mxu0 0
      %677 = vmatpush1.bf16.msra.mxu0 %v573
      %678 = vmatprep.subr.bf16.mxu0 0
      %679 = vmatpush1.bf16.msra.mxu0 %v572
      %680 = vmatprep.subr.bf16.mxu0 0
      %681 = vmatpush1.bf16.msra.mxu0 %v571
      %682 = vmatprep.subr.bf16.mxu0 0
      %683 = vmatpush1.bf16.msra.mxu0 %v570
      %684 = vmatprep.subr.bf16.mxu0 0
      %685 = vmatpush2.bf16.msra.mxu0 0
      %686 = vmatprep.subr.bf16.mxu0 0
      %687 = vmatpush2.bf16.msra.mxu0 0
      %688 = vmatprep.subr.bf16.mxu0 0
      %689 = vmatpush2.bf16.msra.mxu0 0
      %690 = vmatprep.subr.bf16.mxu0 0
      %691 = vmatpush2.bf16.msra.mxu0 0
      %692 = vmatprep.subr.bf16.mxu0 0
      %693 = vmatpush2.bf16.msra.mxu0 0
      %694 = vmatprep.subr.bf16.mxu0 0
      %695 = vmatpush2.bf16.msra.mxu0 0
      %696 = vmatprep.subr.bf16.mxu0 0
      %697 = vmatpush2.bf16.msra.mxu0 0
      %698 = vmatprep.subr.bf16.mxu0 0
      %699 = vmatpush2.bf16.msra.mxu0 0
      %700 = vmatprep.mubr.bf16.mxu0 0
      %701 = vmatmul.mubr.bf16.gmra.mxu0 %v663
      %v702 = vpop.f32.mrf.mxu0
      %v703 = vadd.f32 0.0, %v702
      %v704 = vpop.f32.mrf.mxu0
      %v705 = vpop.f32.mrf.mxu0
      %v706 = vadd.f32 0.0, %v705
      %v707 = vpop.f32.mrf.mxu0
      %708 = vmatprep.mubr.bf16.mxu0 0
      %709 = vmatmul.mubr.bf16.gmra.mxu0 %v666
      %v710 = vpop.f32.mrf.mxu0
      %v711 = vadd.f32 0.0, %v710
      %v712 = vpop.f32.mrf.mxu0
      %v713 = vpop.f32.mrf.mxu0
      %v714 = vadd.f32 0.0, %v713
      %v715 = vpop.f32.mrf.mxu0
      %716 = vdwg.mxu0
      %v717 = vld [vmem:[%s6] sm:$0xff]
      %v718 = vld [vmem:[%s6 + $0x8] sm:$0xff]
      %v719 = vld [vmem:[%s6 + $0x10] sm:$0xff]
      %v720 = vld [vmem:[%s6 + $0x18] sm:$0xff]
      %v721 = vmul.f32 %v632, %v717
      %v722 = vmul.f32 %v635, %v718
      %v723 = vmul.f32 %v640, %v719
      %v724 = vmul.f32 %v643, %v720
      %v725 = vmul.f32 %v703, %v717
      %v726 = vmul.f32 %v706, %v718
      %v727 = vmul.f32 %v711, %v719
      %v728 = vmul.f32 %v714, %v720
      %v729 = vld [vmem:[%s4] sm:$0xff]
      %v730 = vld [vmem:[%s4 + $0x8] sm:$0xff]
      %v731 = vld [vmem:[%s4 + $0x10] sm:$0xff]
      %v732 = vld [vmem:[%s4 + $0x18] sm:$0xff]
      %v734 = vsel %vm323, %v721, 0
      %v737 = vsel %vm323, %v722, 0
      %v740 = vsel %vm323, %v723, 0
      %v743 = vsel %vm323, %v724, 0
      %v746 = vsel %vm323, %v725, 0
      %v749 = vsel %vm323, %v726, 0
      %v752 = vsel %vm323, %v727, 0
      %v755 = vsel %vm323, %v728, 0
      %757 = vmatprep.subr.mxu0 0.0
      %758 = vmatpush1.msra.mxu0 0.0
      %759 = vmatprep.subr.mxu0 0.0
      %760 = vmatpush1.msra.mxu0 0.0
      %761 = vmatprep.subr.mxu0 0.0
      %762 = vmatpush1.msra.mxu0 0.0
      %763 = vmatprep.subr.mxu0 0.0
      %764 = vmatpush1.msra.mxu0 0.0
      %765 = vmatprep.subr.mxu0 0.0
      %766 = vmatpush1.msra.mxu0 0.0
      %767 = vmatprep.subr.mxu0 0.0
      %768 = vmatpush1.msra.mxu0 0.0
      %769 = vmatprep.subr.mxu0 0.0
      %770 = vmatpush1.msra.mxu0 0.0
      %771 = vmatprep.subr.mxu0 0.0
      %772 = vmatpush1.msra.mxu0 0.0
      %773 = vmatprep.subr.mxu0 0.0
      %774 = vmatpush1.msra.mxu0 0.0
      %775 = vmatprep.subr.mxu0 0.0
      %776 = vmatpush1.msra.mxu0 0.0
      %777 = vmatprep.subr.mxu0 0.0
      %778 = vmatpush1.msra.mxu0 0.0
      %779 = vmatprep.subr.mxu0 0.0
      %780 = vmatpush1.msra.mxu0 0.0
      %781 = vmatprep.subr.mxu0 0.0
      %782 = vmatpush1.msra.mxu0 %v732
      %783 = vmatprep.subr.mxu0 0.0
      %784 = vmatpush1.msra.mxu0 %v731
      %785 = vmatprep.subr.mxu0 0.0
      %786 = vmatpush1.msra.mxu0 %v730
      %787 = vmatprep.subr.mxu0 0.0
      %788 = vmatpush1.msra.mxu0 %v729
      %789 = vmatprep.subr.mxu0 0.0
      %790 = vmatpush2.msra.mxu0 0.0
      %791 = vmatprep.subr.mxu0 0.0
      %792 = vmatpush2.msra.mxu0 0.0
      %793 = vmatprep.subr.mxu0 0.0
      %794 = vmatpush2.msra.mxu0 0.0
      %795 = vmatprep.subr.mxu0 0.0
      %796 = vmatpush2.msra.mxu0 0.0
      %797 = vmatprep.subr.mxu0 0.0
      %798 = vmatpush2.msra.mxu0 0.0
      %799 = vmatprep.subr.mxu0 0.0
      %800 = vmatpush2.msra.mxu0 0.0
      %801 = vmatprep.subr.mxu0 0.0
      %802 = vmatpush2.msra.mxu0 0.0
      %803 = vmatprep.subr.mxu0 0.0
      %804 = vmatpush2.msra.mxu0 0.0
      %805 = vmatprep.subr.mxu0 0.0
      %806 = vmatpush2.msra.mxu0 0.0
      %807 = vmatprep.subr.mxu0 0.0
      %808 = vmatpush2.msra.mxu0 0.0
      %809 = vmatprep.subr.mxu0 0.0
      %810 = vmatpush2.msra.mxu0 0.0
      %811 = vmatprep.subr.mxu0 0.0
      %812 = vmatpush2.msra.mxu0 0.0
      %813 = vmatprep.subr.mxu0 0.0
      %814 = vmatpush2.msra.mxu0 0.0
      %815 = vmatprep.subr.mxu0 0.0
      %816 = vmatpush2.msra.mxu0 0.0
      %817 = vmatprep.subr.mxu0 0.0
      %818 = vmatpush2.msra.mxu0 0.0
      %819 = vmatprep.subr.mxu0 0.0
      %820 = vmatpush2.msra.mxu0 0.0
      %821 = vmatprep.mubr.f32.mxu0 0.0
      %822 = vmatmul.mubr.f32.gmra.mxu0 %v734
      %v823 = vpop.f32.mrf.mxu0
      %v824 = vadd.f32 0.0, %v823
      %v825 = vpop.f32.mrf.mxu0
      %826 = vmatprep.mubr.f32.mxu0 0.0
      %827 = vmatmul.mubr.f32.gmra.mxu0 %v737
      %v828 = vpop.f32.mrf.mxu0
      %v829 = vadd.f32 0.0, %v828
      %v830 = vpop.f32.mrf.mxu0
      %831 = vmatprep.mubr.f32.mxu0 0.0
      %832 = vmatmul.mubr.f32.gmra.mxu0 %v740
      %v833 = vpop.f32.mrf.mxu0
      %v834 = vadd.f32 0.0, %v833
      %v835 = vpop.f32.mrf.mxu0
      %836 = vmatprep.mubr.f32.mxu0 0.0
      %837 = vmatmul.mubr.f32.gmra.mxu0 %v743
      %v838 = vpop.f32.mrf.mxu0
      %v839 = vadd.f32 0.0, %v838
      %v840 = vpop.f32.mrf.mxu0
      %841 = vmatprep.mubr.f32.mxu0 0.0
      %842 = vmatmul.mubr.f32.gmra.mxu0 %v746
      %v843 = vpop.f32.mrf.mxu0
      %v844 = vadd.f32 0.0, %v843
      %v845 = vpop.f32.mrf.mxu0
      %846 = vmatprep.mubr.f32.mxu0 0.0
      %847 = vmatmul.mubr.f32.gmra.mxu0 %v749
      %v848 = vpop.f32.mrf.mxu0
      %v849 = vadd.f32 0.0, %v848
      %v850 = vpop.f32.mrf.mxu0
      %851 = vmatprep.mubr.f32.mxu0 0.0
      %852 = vmatmul.mubr.f32.gmra.mxu0 %v752
      %v853 = vpop.f32.mrf.mxu0
      %v854 = vadd.f32 0.0, %v853
      %v855 = vpop.f32.mrf.mxu0
      %856 = vmatprep.mubr.f32.mxu0 0.0
      %857 = vmatmul.mubr.f32.gmra.mxu0 %v755
      %v858 = vpop.f32.mrf.mxu0
      %v859 = vadd.f32 0.0, %v858
      %v860 = vpop.f32.mrf.mxu0
      %861 = vdwg.mxu0
      %v862 = vld [vmem:[%s3] sm:$0xff]
      %v863 = vld [vmem:[%s3 + $0x8] sm:$0xff]
      %v864 = vld [vmem:[%s3 + $0x10] sm:$0xff]
      %v865 = vld [vmem:[%s3 + $0x18] sm:$0xff]
      %v867 = vsel %vm323, %v862, 0
      %v870 = vsel %vm323, %v863, 0
      %v873 = vsel %vm323, %v864, 0
      %v876 = vsel %vm323, %v865, 0
      %878 = vmatprep.subr.mxu0 0.0
      %879 = vmatpush1.msra.mxu0 0.0
      %880 = vmatprep.subr.mxu0 0.0
      %881 = vmatpush1.msra.mxu0 0.0
      %882 = vmatprep.subr.mxu0 0.0
      %883 = vmatpush1.msra.mxu0 0.0
      %884 = vmatprep.subr.mxu0 0.0
      %885 = vmatpush1.msra.mxu0 0.0
      %886 = vmatprep.subr.mxu0 0.0
      %887 = vmatpush1.msra.mxu0 0.0
      %888 = vmatprep.subr.mxu0 0.0
      %889 = vmatpush1.msra.mxu0 0.0
      %890 = vmatprep.subr.mxu0 0.0
      %891 = vmatpush1.msra.mxu0 0.0
      %892 = vmatprep.subr.mxu0 0.0
      %893 = vmatpush1.msra.mxu0 0.0
      %894 = vmatprep.subr.mxu0 0.0
      %895 = vmatpush1.msra.mxu0 0.0
      %896 = vmatprep.subr.mxu0 0.0
      %897 = vmatpush1.msra.mxu0 0.0
      %898 = vmatprep.subr.mxu0 0.0
      %899 = vmatpush1.msra.mxu0 0.0
      %900 = vmatprep.subr.mxu0 0.0
      %901 = vmatpush1.msra.mxu0 0.0
      %902 = vmatprep.subr.mxu0 0.0
      %903 = vmatpush1.msra.mxu0 %v839
      %904 = vmatprep.subr.mxu0 0.0
      %905 = vmatpush1.msra.mxu0 %v834
      %906 = vmatprep.subr.mxu0 0.0
      %907 = vmatpush1.msra.mxu0 %v829
      %908 = vmatprep.subr.mxu0 0.0
      %909 = vmatpush1.msra.mxu0 %v824
      %910 = vmatprep.subr.mxu0 0.0
      %911 = vmatpush2.msra.mxu0 0.0
      %912 = vmatprep.subr.mxu0 0.0
      %913 = vmatpush2.msra.mxu0 0.0
      %914 = vmatprep.subr.mxu0 0.0
      %915 = vmatpush2.msra.mxu0 0.0
      %916 = vmatprep.subr.mxu0 0.0
      %917 = vmatpush2.msra.mxu0 0.0
      %918 = vmatprep.subr.mxu0 0.0
      %919 = vmatpush2.msra.mxu0 0.0
      %920 = vmatprep.subr.mxu0 0.0
      %921 = vmatpush2.msra.mxu0 0.0
      %922 = vmatprep.subr.mxu0 0.0
      %923 = vmatpush2.msra.mxu0 0.0
      %924 = vmatprep.subr.mxu0 0.0
      %925 = vmatpush2.msra.mxu0 0.0
      %926 = vmatprep.subr.mxu0 0.0
      %927 = vmatpush2.msra.mxu0 0.0
      %928 = vmatprep.subr.mxu0 0.0
      %929 = vmatpush2.msra.mxu0 0.0
      %930 = vmatprep.subr.mxu0 0.0
      %931 = vmatpush2.msra.mxu0 0.0
      %932 = vmatprep.subr.mxu0 0.0
      %933 = vmatpush2.msra.mxu0 0.0
      %934 = vmatprep.subr.mxu0 0.0
      %935 = vmatpush2.msra.mxu0 0.0
      %936 = vmatprep.subr.mxu0 0.0
      %937 = vmatpush2.msra.mxu0 0.0
      %938 = vmatprep.subr.mxu0 0.0
      %939 = vmatpush2.msra.mxu0 0.0
      %940 = vmatprep.subr.mxu0 0.0
      %941 = vmatpush2.msra.mxu0 0.0
      %942 = vmatprep.mubr.f32.mxu0 0.0
      %943 = vmatmul.mubr.f32.gmra.mxu0 %v867
      %v944 = vpop.f32.mrf.mxu0
      %v945 = vadd.f32 0.0, %v944
      %v946 = vpop.f32.mrf.mxu0
      %947 = vmatprep.mubr.f32.mxu0 0.0
      %948 = vmatmul.mubr.f32.gmra.mxu0 %v870
      %v949 = vpop.f32.mrf.mxu0
      %v950 = vadd.f32 0.0, %v949
      %v951 = vpop.f32.mrf.mxu0
      %952 = vmatprep.mubr.f32.mxu0 0.0
      %953 = vmatmul.mubr.f32.gmra.mxu0 %v873
      %v954 = vpop.f32.mrf.mxu0
      %v955 = vadd.f32 0.0, %v954
      %v956 = vpop.f32.mrf.mxu0
      %957 = vmatprep.mubr.f32.mxu0 0.0
      %958 = vmatmul.mubr.f32.gmra.mxu0 %v876
      %v959 = vpop.f32.mrf.mxu0
      %v960 = vadd.f32 0.0, %v959
      %v961 = vpop.f32.mrf.mxu0
      %962 = vdwg.mxu0
      %963 = vmatprep.subr.mxu0 0.0
      %964 = vmatpush1.msra.mxu0 0.0
      %965 = vmatprep.subr.mxu0 0.0
      %966 = vmatpush1.msra.mxu0 0.0
      %967 = vmatprep.subr.mxu0 0.0
      %968 = vmatpush1.msra.mxu0 0.0
      %969 = vmatprep.subr.mxu0 0.0
      %970 = vmatpush1.msra.mxu0 0.0
      %971 = vmatprep.subr.mxu0 0.0
      %972 = vmatpush1.msra.mxu0 0.0
      %973 = vmatprep.subr.mxu0 0.0
      %974 = vmatpush1.msra.mxu0 0.0
      %975 = vmatprep.subr.mxu0 0.0
      %976 = vmatpush1.msra.mxu0 0.0
      %977 = vmatprep.subr.mxu0 0.0
      %978 = vmatpush1.msra.mxu0 0.0
      %979 = vmatprep.subr.mxu0 0.0
      %980 = vmatpush1.msra.mxu0 0.0
      %981 = vmatprep.subr.mxu0 0.0
      %982 = vmatpush1.msra.mxu0 0.0
      %983 = vmatprep.subr.mxu0 0.0
      %984 = vmatpush1.msra.mxu0 0.0
      %985 = vmatprep.subr.mxu0 0.0
      %986 = vmatpush1.msra.mxu0 0.0
      %987 = vmatprep.subr.mxu0 0.0
      %988 = vmatpush1.msra.mxu0 %v859
      %989 = vmatprep.subr.mxu0 0.0
      %990 = vmatpush1.msra.mxu0 %v854
      %991 = vmatprep.subr.mxu0 0.0
      %992 = vmatpush1.msra.mxu0 %v849
      %993 = vmatprep.subr.mxu0 0.0
      %994 = vmatpush1.msra.mxu0 %v844
      %995 = vmatprep.subr.mxu0 0.0
      %996 = vmatpush2.msra.mxu0 0.0
      %997 = vmatprep.subr.mxu0 0.0
      %998 = vmatpush2.msra.mxu0 0.0
      %999 = vmatprep.subr.mxu0 0.0
      %1000 = vmatpush2.msra.mxu0 0.0
      %1001 = vmatprep.subr.mxu0 0.0
      %1002 = vmatpush2.msra.mxu0 0.0
      %1003 = vmatprep.subr.mxu0 0.0
      %1004 = vmatpush2.msra.mxu0 0.0
      %1005 = vmatprep.subr.mxu0 0.0
      %1006 = vmatpush2.msra.mxu0 0.0
      %1007 = vmatprep.subr.mxu0 0.0
      %1008 = vmatpush2.msra.mxu0 0.0
      %1009 = vmatprep.subr.mxu0 0.0
      %1010 = vmatpush2.msra.mxu0 0.0
      %1011 = vmatprep.subr.mxu0 0.0
      %1012 = vmatpush2.msra.mxu0 0.0
      %1013 = vmatprep.subr.mxu0 0.0
      %1014 = vmatpush2.msra.mxu0 0.0
      %1015 = vmatprep.subr.mxu0 0.0
      %1016 = vmatpush2.msra.mxu0 0.0
      %1017 = vmatprep.subr.mxu0 0.0
      %1018 = vmatpush2.msra.mxu0 0.0
      %1019 = vmatprep.subr.mxu0 0.0
      %1020 = vmatpush2.msra.mxu0 0.0
      %1021 = vmatprep.subr.mxu0 0.0
      %1022 = vmatpush2.msra.mxu0 0.0
      %1023 = vmatprep.subr.mxu0 0.0
      %1024 = vmatpush2.msra.mxu0 0.0
      %1025 = vmatprep.subr.mxu0 0.0
      %1026 = vmatpush2.msra.mxu0 0.0
      %1027 = vmatprep.mubr.f32.mxu0 0.0
      %1028 = vmatmul.mubr.f32.gmra.mxu0 %v867
      %v1029 = vpop.f32.mrf.mxu0
      %v1030 = vadd.f32 0.0, %v1029
      %v1031 = vpop.f32.mrf.mxu0
      %1032 = vmatprep.mubr.f32.mxu0 0.0
      %1033 = vmatmul.mubr.f32.gmra.mxu0 %v870
      %v1034 = vpop.f32.mrf.mxu0
      %v1035 = vadd.f32 0.0, %v1034
      %v1036 = vpop.f32.mrf.mxu0
      %1037 = vmatprep.mubr.f32.mxu0 0.0
      %1038 = vmatmul.mubr.f32.gmra.mxu0 %v873
      %v1039 = vpop.f32.mrf.mxu0
      %v1040 = vadd.f32 0.0, %v1039
      %v1041 = vpop.f32.mrf.mxu0
      %1042 = vmatprep.mubr.f32.mxu0 0.0
      %1043 = vmatmul.mubr.f32.gmra.mxu0 %v876
      %v1044 = vpop.f32.mrf.mxu0
      %v1045 = vadd.f32 0.0, %v1044
      %v1046 = vpop.f32.mrf.mxu0
      %1047 = vdwg.mxu0
      %v1048 = vpack.c.bf16 %v950, %v945
      %v1049 = vpack.c.bf16 %v960, %v955
      %v1050 = vpack.c.bf16 %v1035, %v1030
      %v1051 = vpack.c.bf16 %v1045, %v1040
      %1052 = vmatprep.subr.bf16.mxu0 0
      %1053 = vmatpush1.bf16.msra.mxu0 0
      %1054 = vmatprep.subr.bf16.mxu0 0
      %1055 = vmatpush1.bf16.msra.mxu0 0
      %1056 = vmatprep.subr.bf16.mxu0 0
      %1057 = vmatpush1.bf16.msra.mxu0 0
      %1058 = vmatprep.subr.bf16.mxu0 0
      %1059 = vmatpush1.bf16.msra.mxu0 0
      %1060 = vmatprep.subr.bf16.mxu0 0
      %1061 = vmatpush1.bf16.msra.mxu0 0
      %1062 = vmatprep.subr.bf16.mxu0 0
      %1063 = vmatpush1.bf16.msra.mxu0 0
      %1064 = vmatprep.subr.bf16.mxu0 0
      %1065 = vmatpush1.bf16.msra.mxu0 %v1049
      %1066 = vmatprep.subr.bf16.mxu0 0
      %1067 = vmatpush1.bf16.msra.mxu0 %v1048
      %1068 = vmatprep.subr.bf16.mxu0 0
      %1069 = vmatpush2.bf16.msra.mxu0 0
      %1070 = vmatprep.subr.bf16.mxu0 0
      %1071 = vmatpush2.bf16.msra.mxu0 0
      %1072 = vmatprep.subr.bf16.mxu0 0
      %1073 = vmatpush2.bf16.msra.mxu0 0
      %1074 = vmatprep.subr.bf16.mxu0 0
      %1075 = vmatpush2.bf16.msra.mxu0 0
      %1076 = vmatprep.subr.bf16.mxu0 0
      %1077 = vmatpush2.bf16.msra.mxu0 0
      %1078 = vmatprep.subr.bf16.mxu0 0
      %1079 = vmatpush2.bf16.msra.mxu0 0
      %1080 = vmatprep.subr.bf16.mxu0 0
      %1081 = vmatpush2.bf16.msra.mxu0 0
      %1082 = vmatprep.subr.bf16.mxu0 0
      %1083 = vmatpush2.bf16.msra.mxu0 0
      %1084 = vmatprep.mubr.bf16.mxu0 0
      %1085 = vmatmul.mubr.bf16.gmra.mxu0 %v325
      %v1086 = vpop.f32.mrf.mxu0
      %v1087 = vadd.f32 0.0, %v1086
      %v1088 = vpop.f32.mrf.mxu0
      %v1089 = vpop.f32.mrf.mxu0
      %v1090 = vadd.f32 0.0, %v1089
      %v1091 = vpop.f32.mrf.mxu0
      %1092 = vmatprep.mubr.bf16.mxu0 0
      %1093 = vmatmul.mubr.bf16.gmra.mxu0 %v328
      %v1094 = vpop.f32.mrf.mxu0
      %v1095 = vadd.f32 0.0, %v1094
      %v1096 = vpop.f32.mrf.mxu0
      %v1097 = vpop.f32.mrf.mxu0
      %v1098 = vadd.f32 0.0, %v1097
      %v1099 = vpop.f32.mrf.mxu0
      %1100 = vmatprep.mubr.bf16.mxu0 0
      %1101 = vmatmul.mubr.bf16.gmra.mxu0 %v331
      %v1102 = vpop.f32.mrf.mxu0
      %v1103 = vadd.f32 0.0, %v1102
      %v1104 = vpop.f32.mrf.mxu0
      %v1105 = vpop.f32.mrf.mxu0
      %v1106 = vadd.f32 0.0, %v1105
      %v1107 = vpop.f32.mrf.mxu0
      %1108 = vmatprep.mubr.bf16.mxu0 0
      %1109 = vmatmul.mubr.bf16.gmra.mxu0 %v334
      %v1110 = vpop.f32.mrf.mxu0
      %v1111 = vadd.f32 0.0, %v1110
      %v1112 = vpop.f32.mrf.mxu0
      %v1113 = vpop.f32.mrf.mxu0
      %v1114 = vadd.f32 0.0, %v1113
      %v1115 = vpop.f32.mrf.mxu0
      %1116 = vdwg.mxu0
      %1117 = vmatprep.subr.bf16.mxu0 0
      %1118 = vmatpush1.bf16.msra.mxu0 0
      %1119 = vmatprep.subr.bf16.mxu0 0
      %1120 = vmatpush1.bf16.msra.mxu0 0
      %1121 = vmatprep.subr.bf16.mxu0 0
      %1122 = vmatpush1.bf16.msra.mxu0 0
      %1123 = vmatprep.subr.bf16.mxu0 0
      %1124 = vmatpush1.bf16.msra.mxu0 0
      %1125 = vmatprep.subr.bf16.mxu0 0
      %1126 = vmatpush1.bf16.msra.mxu0 0
      %1127 = vmatprep.subr.bf16.mxu0 0
      %1128 = vmatpush1.bf16.msra.mxu0 0
      %1129 = vmatprep.subr.bf16.mxu0 0
      %1130 = vmatpush1.bf16.msra.mxu0 %v1051
      %1131 = vmatprep.subr.bf16.mxu0 0
      %1132 = vmatpush1.bf16.msra.mxu0 %v1050
      %1133 = vmatprep.subr.bf16.mxu0 0
      %1134 = vmatpush2.bf16.msra.mxu0 0
      %1135 = vmatprep.subr.bf16.mxu0 0
      %1136 = vmatpush2.bf16.msra.mxu0 0
      %1137 = vmatprep.subr.bf16.mxu0 0
      %1138 = vmatpush2.bf16.msra.mxu0 0
      %1139 = vmatprep.subr.bf16.mxu0 0
      %1140 = vmatpush2.bf16.msra.mxu0 0
      %1141 = vmatprep.subr.bf16.mxu0 0
      %1142 = vmatpush2.bf16.msra.mxu0 0
      %1143 = vmatprep.subr.bf16.mxu0 0
      %1144 = vmatpush2.bf16.msra.mxu0 0
      %1145 = vmatprep.subr.bf16.mxu0 0
      %1146 = vmatpush2.bf16.msra.mxu0 0
      %1147 = vmatprep.subr.bf16.mxu0 0
      %1148 = vmatpush2.bf16.msra.mxu0 0
      %1149 = vmatprep.mubr.bf16.mxu0 0
      %1150 = vmatmul.mubr.bf16.gmra.mxu0 %v337
      %v1151 = vpop.f32.mrf.mxu0
      %v1152 = vadd.f32 0.0, %v1151
      %v1153 = vpop.f32.mrf.mxu0
      %v1154 = vpop.f32.mrf.mxu0
      %v1155 = vadd.f32 0.0, %v1154
      %v1156 = vpop.f32.mrf.mxu0
      %1157 = vmatprep.mubr.bf16.mxu0 0
      %1158 = vmatmul.mubr.bf16.gmra.mxu0 %v340
      %v1159 = vpop.f32.mrf.mxu0
      %v1160 = vadd.f32 0.0, %v1159
      %v1161 = vpop.f32.mrf.mxu0
      %v1162 = vpop.f32.mrf.mxu0
      %v1163 = vadd.f32 0.0, %v1162
      %v1164 = vpop.f32.mrf.mxu0
      %1165 = vmatprep.mubr.bf16.mxu0 0
      %1166 = vmatmul.mubr.bf16.gmra.mxu0 %v343
      %v1167 = vpop.f32.mrf.mxu0
      %v1168 = vadd.f32 0.0, %v1167
      %v1169 = vpop.f32.mrf.mxu0
      %v1170 = vpop.f32.mrf.mxu0
      %v1171 = vadd.f32 0.0, %v1170
      %v1172 = vpop.f32.mrf.mxu0
      %1173 = vmatprep.mubr.bf16.mxu0 0
      %1174 = vmatmul.mubr.bf16.gmra.mxu0 %v346
      %v1175 = vpop.f32.mrf.mxu0
      %v1176 = vadd.f32 0.0, %v1175
      %v1177 = vpop.f32.mrf.mxu0
      %v1178 = vpop.f32.mrf.mxu0
      %v1179 = vadd.f32 0.0, %v1178
      %v1180 = vpop.f32.mrf.mxu0
      %1181 = vdwg.mxu0
      %v1182 = vld [vmem:[%s5] sm:$0x1]
      %v1184 = vlaneseq
      %v1185 = vshrl.u32 %v1184, 7
      %v1186 = vsub.s32 0, %v1185
      %v1187 = vrot.slane %v1182, %v1186
      %v1189 = vadd.f32 %v1087, %v1187
      %v1190 = vadd.f32 %v1090, %v1187
      %v1191 = vadd.f32 %v1095, %v1187
      %v1192 = vadd.f32 %v1098, %v1187
      %v1193 = vadd.f32 %v1103, %v1187
      %v1194 = vadd.f32 %v1106, %v1187
      %v1195 = vadd.f32 %v1111, %v1187
      %v1196 = vadd.f32 %v1114, %v1187
      %v1197 = vadd.f32 %v1152, %v1187
      %v1198 = vadd.f32 %v1155, %v1187
      %v1199 = vadd.f32 %v1160, %v1187
      %v1200 = vadd.f32 %v1163, %v1187
      %v1201 = vadd.f32 %v1168, %v1187
      %v1202 = vadd.f32 %v1171, %v1187
      %v1203 = vadd.f32 %v1176, %v1187
      %v1204 = vadd.f32 %v1179, %v1187
      %1205 = vst.msk [vmem:[%s280] sm:$0xff] %vm323, %v1189
      %1206 = vst.msk [vmem:[%s280 + $0x8] sm:$0xff] %vm323, %v1190
      %1207 = vst.msk [vmem:[%s280 + $0x10] sm:$0xff] %vm323, %v1191
      %1208 = vst.msk [vmem:[%s280 + $0x18] sm:$0xff] %vm323, %v1192
      %1209 = vst.msk [vmem:[%s280 + $0x20] sm:$0xff] %vm323, %v1193
      %1210 = vst.msk [vmem:[%s280 + $0x28] sm:$0xff] %vm323, %v1194
      %1211 = vst.msk [vmem:[%s280 + $0x30] sm:$0xff] %vm323, %v1195
      %1212 = vst.msk [vmem:[%s280 + $0x38] sm:$0xff] %vm323, %v1196
      %1213 = vst.msk [vmem:[%s280 + $0x40] sm:$0xff] %vm323, %v1197
      %1214 = vst.msk [vmem:[%s280 + $0x48] sm:$0xff] %vm323, %v1198
      %1215 = vst.msk [vmem:[%s280 + $0x50] sm:$0xff] %vm323, %v1199
      %1216 = vst.msk [vmem:[%s280 + $0x58] sm:$0xff] %vm323, %v1200
      %1217 = vst.msk [vmem:[%s280 + $0x60] sm:$0xff] %vm323, %v1201
      %1218 = vst.msk [vmem:[%s280 + $0x68] sm:$0xff] %vm323, %v1202
      %1219 = vst.msk [vmem:[%s280 + $0x70] sm:$0xff] %vm323, %v1203
      %1220 = vst.msk [vmem:[%s280 + $0x78] sm:$0xff] %vm323, %v1204
      %s1221 = smul.u32 16, %s18
      %p1222 = scmp.lt.s32.totalorder %s1221, 31
      %s1223 = scalar_select %p1222, %s1221, 31
      %s1224 = smul.addr %s1223, 8
      %s1225 = scalar_lea.vmem %s7, %s1224
      // Predicated region
      $region49: #{tpu_custom_call.1} parent=47 // pred_check
        %p1226 = pneg %p188
      $region50: #{tpu_custom_call.1} parent=47 // pred_check_branch
        %1228 = sbr.rel (%p1226) target = $region52
      $region51: #{tpu_custom_call.1} parent=47 // pred_region
        %s1229 = smul.u32 16, %s18
      $region52: #{tpu_custom_call.1} parent=47 // pred_fallthru
        _
    $region48: #{tpu_custom_call.1} parent=5 // pred_fallthru
      _
    %p1230 = scmp.le.s32.totalorder 2, %s13
    // Predicated region
    $region53: #{tpu_custom_call.1} parent=5 // pred_check
      %p1231 = pneg %p1230
    $region54: #{tpu_custom_call.1} parent=5 // pred_check_branch
      %1233 = sbr.rel (%p1231) target = $region56
    $region55: #{tpu_custom_call.1} parent=5 // pred_region
      %s1234 = ssub.s32 %s13, 2
      // Predicated region
      $region57: #{tpu_custom_call.1} parent=55 // pred_check
        %p1235 = pneg %p194
      $region58: #{tpu_custom_call.1} parent=55 // pred_check_branch
        %1237 = sbr.rel (%p1235) target = $region60
      $region59: #{tpu_custom_call.1} parent=55 // pred_region
        %s1238 = smul.u32 16, %s19
        %p1239 = scmp.lt.s32.totalorder %s1238, 31
        %s1240 = scalar_select %p1239, %s1238, 31
        %s1241 = smul.addr %s1240, 8
        %s1242 = scalar_lea.vmem %s7, %s1241
      $region60: #{tpu_custom_call.1} parent=55 // pred_fallthru
        _
    $region56: #{tpu_custom_call.1} parent=5 // pred_fallthru
      _
  $region6: #{tpu_custom_call.1} parent=0 // loop_footer
    %s17 = sadd.s32 1, %s13
  $region7: #{tpu_custom_call.1} parent=0 // loop_footer_branch
    %12 = sbr.rel target = $region3
  $region8: #{tpu_custom_call.1} parent=0 // loop_exit
    _

</llo_original>
